<compile_context>
chip_gen: v5e
topology: v5e:2x2
jax: 0.10.0
libtpu: 0.0.40
codegen_flags: <defaults>
</compile_context>

<pallas_src>
import functools

import jax
import jax.numpy as jnp
from jax import lax
from jax.experimental import pallas as pl
from jax.experimental.pallas import tpu as pltpu

NUM_ACTIONS = 4
ACTION_DIM = 32  # ActionEncoder(out_dim=32)
SUBLANE = 8


def _round_up(x, m):
    return (x + m - 1) // m * m


def predictor_kernel(sx_ref, a_ref, tbl_ref, w1_ref, w2_ref, b2_ref, o_ref):
    """Two MXU matmuls + ReLU + residual; action path rebuilt from a tiny table.

    concat([s_x, s_a], 1) @ W1 + b1 == s_x @ W1[:E, :] + (emb[a] @ W1[E:, :] + b1)
    where the second term is one_hot(a) @ tbl with tbl resident in VMEM.
    """
    sx = sx_ref[...]                                   # (tb, E), f32 or bf16
    tb = sx.shape[0]
    a_pad = tbl_ref.shape[0]                           # 8 (NUM_ACTIONS padded)

    # Per-row first-layer bias via one-hot MXU matmul (tiny K, resident table).
    iota = lax.broadcasted_iota(jnp.int32, (tb, a_pad), 1)
    onehot = (a_ref[...] == iota).astype(tbl_ref.dtype)          # (tb, 8)
    rb = jnp.dot(onehot, tbl_ref[...],
                 preferred_element_type=jnp.float32)             # (tb, H) f32

    # First linear (s_x slab of W1) + folded action bias, then ReLU (f32).
    h = jnp.dot(sx, w1_ref[...], preferred_element_type=jnp.float32) + rb
    h = jnp.maximum(h, 0.0)

    # Second linear + residual connection (f32 accumulate / elementwise).
    y = jnp.dot(h.astype(w2_ref.dtype), w2_ref[...],
                preferred_element_type=jnp.float32) + b2_ref[...]
    o_ref[...] = (sx.astype(jnp.float32) + y).astype(o_ref.dtype)


@functools.partial(jax.jit, static_argnames=("tb", "use_bf16"))
def predictor_forward(s_x, a, params, *, tb=None, use_bf16=False):
    """s_x: (B, E) float32, a: (B,) int32 in [0, NUM_ACTIONS)."""
    emb, w1, b1, w2, b2 = params
    B, E = s_x.shape
    H = w1.shape[1]
    assert w1.shape[0] == E + ACTION_DIM

    # ---- tiny wrapper-side precompute (a few KiB; fused by XLA) ----
    # Action-bias table: emb @ W1[E:, :] + b1 -> (NUM_ACTIONS, H), sublane-padded.
    A_pad = _round_up(NUM_ACTIONS, SUBLANE)
    act_tbl = jnp.zeros((A_pad, H), jnp.float32).at[:NUM_ACTIONS, :].set(
        (emb @ w1[E:, :] + b1).astype(jnp.float32))

    act_dtype = jnp.bfloat16 if use_bf16 else jnp.float32
    out_dtype = jnp.bfloat16 if use_bf16 else jnp.float32

    # Batch tiling: big tiles amortize per-step overhead; prefer >=2 grid steps
    # so the "parallel" axis can shard across both TensorCores on v7x.
    sub = 2 * SUBLANE if use_bf16 else SUBLANE
    B_min = _round_up(B, sub)
    if tb is None:
        tb = min(512, _round_up(max(B_min // 2, sub), sub))
    tb = max(sub, _round_up(tb, sub))
    B_pad = _round_up(B_min, tb)

    # Only the batch dim is padded (single cheap pad); feature dims stay exact.
    sx_p = jnp.zeros((B_pad, E), act_dtype).at[:B, :].set(s_x.astype(act_dtype))
    a_p = jnp.zeros((B_pad, 1), jnp.int32).at[:B, 0].set(a.astype(jnp.int32))
    w1s = w1[:E, :].astype(act_dtype)          # (E, H) slab for s_x
    w2c = w2.astype(act_dtype)                 # (H, E)
    b2r = b2.astype(jnp.float32).reshape(1, E)

    grid = (B_pad // tb,)

    def batch_spec(feat):
        return pl.BlockSpec((tb, feat), lambda i: (i, 0))

    def resident_spec(shape):
        # Constant block index -> DMA'd once, stays resident across grid steps.
        return pl.BlockSpec(shape, lambda i: (0, 0))

    in_specs = [
        batch_spec(E),                 # s_x
        batch_spec(1),                 # action ids
        resident_spec((A_pad, H)),     # action-bias table
        resident_spec((E, H)),         # W1[:E, :]
        resident_spec((H, E)),         # W2
        resident_spec((1, E)),         # b2
    ]
    out_specs = batch_spec(E)

    act_sz = jnp.dtype(act_dtype).itemsize
    out_sz = jnp.dtype(out_dtype).itemsize
    bytes_accessed = int(
        B_pad * E * act_sz + B_pad * 4 + B_pad * E * out_sz
        + 4 * (A_pad * H) + (E * H + H * E) * act_sz + 4 * E)
    cost = pl.CostEstimate(
        flops=2 * B_pad * H * (2 * E + A_pad),   # two matmuls + one-hot matmul
        transcendentals=0,
        bytes_accessed=bytes_accessed)

    # Double-buffered streams + resident weights; only request more scoped VMEM
    # when a user-swept tile would exceed v5e's 16 MiB default.
    vmem_est = 2 * tb * (E * act_sz + E * out_sz + 4) + 4 * (A_pad * H + 2 * E * H + E)
    vmem_limit = None
    if vmem_est > (12 << 20):
        vmem_limit = min(int(2 * vmem_est), 64 << 20)

    out = pl.pallas_call(
        predictor_kernel,
        out_shape=jax.ShapeDtypeStruct((B_pad, E), out_dtype),
        grid_spec=pltpu.PrefetchScalarGridSpec(
            num_scalar_prefetch=0,
            grid=grid,
            in_specs=in_specs,
            out_specs=out_specs,
        ),
        compiler_params=pltpu.CompilerParams(
            dimension_semantics=("parallel",),
            vmem_limit_bytes=vmem_limit),
        cost_estimate=cost,
    )(sx_p, a_p, act_tbl, w1s, w2c, b2r)

    # Slice away batch padding only (padded rows hold garbage by design).
    return out[:B, :]


def init_params(key, encoder_dim):
    """Deterministic synthetic parameters matching the module's shapes."""
    input_dim = encoder_dim + ACTION_DIM
    hidden = input_dim * 2
    k_emb, k_w1, k_b1, k_w2, k_b2 = jax.random.split(key, 5)
    emb = jax.random.normal(k_emb, (NUM_ACTIONS, ACTION_DIM), jnp.float32)
    # Uniform(-1/sqrt(fan_in), 1/sqrt(fan_in)) like PyTorch Linear default.
    lim1 = 1.0 / jnp.sqrt(input_dim)
    lim2 = 1.0 / jnp.sqrt(hidden)
    w1 = jax.random.uniform(k_w1, (input_dim, hidden), jnp.float32, -lim1, lim1)
    b1 = jax.random.uniform(k_b1, (hidden,), jnp.float32, -lim1, lim1)
    w2 = jax.random.uniform(k_w2, (hidden, encoder_dim), jnp.float32, -lim2, lim2)
    b2 = jax.random.uniform(k_b2, (encoder_dim,), jnp.float32, -lim2, lim2)
    return emb, w1, b1, w2, b2


def reference_forward(s_x, a, params):
    emb, w1, b1, w2, b2 = params
    s_a = emb[a]
    x = jnp.concatenate([s_x, s_a], axis=1)
    h = jnp.maximum(x @ w1 + b1, 0.0)
    return s_x + (h @ w2 + b2)


if __name__ == "__main__":
    ENCODER_DIM = 32

    key = jax.random.PRNGKey(0)
    k_params, k_sx, k_a, k_sx2, k_a2 = jax.random.split(key, 5)
    params = init_params(k_params, ENCODER_DIM)

    # --- small demo problem (module-like sizes): B=8, E=32 ---
    B = 8
    s_x = jax.random.normal(k_sx, (B, ENCODER_DIM), jnp.float32)
    a = jax.random.randint(k_a, (B,), 0, NUM_ACTIONS, dtype=jnp.int32)

    out = jax.block_until_ready(predictor_forward(s_x, a, params))
    ref = reference_forward(s_x, a, params)
    assert out.shape == (B, ENCODER_DIM)
    assert jnp.allclose(out, ref, atol=1e-5, rtol=1e-5), "f32 mismatch vs reference"

    # --- ragged batch (not a multiple of the tile): batch padding + 2 grid steps ---
    B2 = 300
    s_x2 = jax.random.normal(k_sx2, (B2, ENCODER_DIM), jnp.float32)
    a2 = jax.random.randint(k_a2, (B2,), 0, NUM_ACTIONS, dtype=jnp.int32)

    out2 = jax.block_until_ready(predictor_forward(s_x2, a2, params))
    ref2 = reference_forward(s_x2, a2, params)
    assert out2.shape == (B2, ENCODER_DIM)
    assert jnp.allclose(out2, ref2, atol=1e-5, rtol=1e-5), "ragged-batch mismatch"

    # --- explicit tile override still works (exercises the tb path) ---
    out2b = jax.block_until_ready(predictor_forward(s_x2, a2, params, tb=256))
    assert jnp.allclose(out2b, ref2, atol=1e-5, rtol=1e-5), "tb override mismatch"

    # --- bf16 streamed activations/weights (f32 accumulate), tightened tolerance ---
    out3 = jax.block_until_ready(predictor_forward(s_x2, a2, params, use_bf16=True))
    assert out3.shape == (B2, ENCODER_DIM)
    assert jnp.allclose(out3.astype(jnp.float32), ref2, atol=3e-2, rtol=3e-2), \
        "bf16 mismatch"

    print("KERNEL_OK")
</pallas_src>

<mosaic_0001>
module attributes {stable_mosaic.version = 11 : i64} {
  func.func @predictor_kernel(%arg0: i32, %arg1: memref<8x32xf32, #tpu.memory_space<vmem>>, %arg2: memref<8x1xi32, #tpu.memory_space<vmem>>, %arg3: memref<8x128xf32, #tpu.memory_space<vmem>>, %arg4: memref<32x128xf32, #tpu.memory_space<vmem>>, %arg5: memref<128x32xf32, #tpu.memory_space<vmem>>, %arg6: memref<1x32xf32, #tpu.memory_space<vmem>>, %arg7: memref<8x32xf32, #tpu.memory_space<vmem>>) attributes {dimension_semantics = [#tpu.dimension_semantics<parallel>], iteration_bounds = array<i64: 1>, scalar_prefetch = 0 : i64, scratch_operands = 0 : i64, tpu.core_type = #tpu.core_type<tc>, window_params = [{transform_indices = @transform_0, window_bounds = array<i64: 8, 32>}, {transform_indices = @transform_1, window_bounds = array<i64: 8, 1>}, {pipeline_mode = #tpu.pipeline_mode<synchronous>, transform_indices = @transform_2, window_bounds = array<i64: 8, 128>}, {pipeline_mode = #tpu.pipeline_mode<synchronous>, transform_indices = @transform_3, window_bounds = array<i64: 32, 128>}, {pipeline_mode = #tpu.pipeline_mode<synchronous>, transform_indices = @transform_4, window_bounds = array<i64: 128, 32>}, {pipeline_mode = #tpu.pipeline_mode<synchronous>, transform_indices = @transform_5, window_bounds = array<i64: 1, 32>}, {transform_indices = @transform_6, window_bounds = array<i64: 8, 32>}]} {
    %c0 = arith.constant 0 : index
    %c0_0 = arith.constant 0 : index
    %0 = vector.load %arg1[%c0, %c0_0] : memref<8x32xf32, #tpu.memory_space<vmem>>, vector<8x32xf32>
    %1 = tpu.iota {dimensions = array<i32: 1>} : vector<8x8xi32>
    %c0_1 = arith.constant 0 : index
    %c0_2 = arith.constant 0 : index
    %2 = vector.load %arg2[%c0_1, %c0_2] : memref<8x1xi32, #tpu.memory_space<vmem>>, vector<8x1xi32>
    %3 = vector.broadcast %2 : vector<8x1xi32> to vector<8x8xi32>
    %4 = arith.cmpi eq, %3, %1 : vector<8x8xi32>
    %5 = arith.extui %4 : vector<8x8xi1> to vector<8x8xi32>
    %6 = arith.sitofp %5 : vector<8x8xi32> to vector<8x8xf32>
    %c0_3 = arith.constant 0 : index
    %c0_4 = arith.constant 0 : index
    %7 = vector.load %arg3[%c0_3, %c0_4] : memref<8x128xf32, #tpu.memory_space<vmem>>, vector<8x128xf32>
    %cst = arith.constant dense<0.000000e+00> : vector<8x128xf32>
    %8 = tpu.matmul %6, %7, %cst {dimension_numbers = #tpu.dot_dimension_numbers<[1], [0], [0], [1], [0, 0, 1, 1], [], []>} : vector<8x8xf32>, vector<8x128xf32>, vector<8x128xf32> -> vector<8x128xf32>
    %c0_5 = arith.constant 0 : index
    %c0_6 = arith.constant 0 : index
    %9 = vector.load %arg4[%c0_5, %c0_6] : memref<32x128xf32, #tpu.memory_space<vmem>>, vector<32x128xf32>
    %cst_7 = arith.constant dense<0.000000e+00> : vector<8x128xf32>
    %10 = tpu.matmul %0, %9, %cst_7 {dimension_numbers = #tpu.dot_dimension_numbers<[1], [0], [0], [1], [0, 0, 1, 1], [], []>} : vector<8x32xf32>, vector<32x128xf32>, vector<8x128xf32> -> vector<8x128xf32>
    %11 = arith.addf %10, %8 : vector<8x128xf32>
    %cst_8 = arith.constant 0.000000e+00 : f32
    %12 = vector.broadcast %cst_8 : f32 to vector<8x128xf32>
    %13 = arith.maximumf %11, %12 : vector<8x128xf32>
    %c0_9 = arith.constant 0 : index
    %c0_10 = arith.constant 0 : index
    %14 = vector.load %arg5[%c0_9, %c0_10] : memref<128x32xf32, #tpu.memory_space<vmem>>, vector<128x32xf32>
    %cst_11 = arith.constant dense<0.000000e+00> : vector<8x32xf32>
    %15 = tpu.matmul %13, %14, %cst_11 {dimension_numbers = #tpu.dot_dimension_numbers<[1], [0], [0], [1], [0, 0, 1, 1], [], []>} : vector<8x128xf32>, vector<128x32xf32>, vector<8x32xf32> -> vector<8x32xf32>
    %c0_12 = arith.constant 0 : index
    %c0_13 = arith.constant 0 : index
    %16 = vector.load %arg6[%c0_12, %c0_13] : memref<1x32xf32, #tpu.memory_space<vmem>>, vector<1x32xf32>
    %17 = vector.broadcast %16 : vector<1x32xf32> to vector<8x32xf32>
    %18 = arith.addf %15, %17 : vector<8x32xf32>
    %19 = arith.addf %0, %18 : vector<8x32xf32>
    %c0_14 = arith.constant 0 : index
    %c0_15 = arith.constant 0 : index
    %20 = vector.load %arg7[%c0_14, %c0_15] : memref<8x32xf32, #tpu.memory_space<vmem>>, vector<8x32xf32>
    tpu.vector_store %arg7[%c0_14, %c0_15], %19 {strides = array<i32>} : memref<8x32xf32, #tpu.memory_space<vmem>>, vector<8x32xf32>,
    return
  }
  func.func @transform_0(%arg0: i32) -> (i32, i32) {
    %c0_i32 = arith.constant 0 : i32
    %c0_i32_0 = arith.constant 0 : i32
    return %arg0, %c0_i32 : i32, i32
  }
  func.func @transform_1(%arg0: i32) -> (i32, i32) {
    %c0_i32 = arith.constant 0 : i32
    %c0_i32_0 = arith.constant 0 : i32
    return %arg0, %c0_i32 : i32, i32
  }
  func.func @transform_2(%arg0: i32) -> (i32, i32) {
    %c0_i32 = arith.constant 0 : i32
    %c0_i32_0 = arith.constant 0 : i32
    %c0_i32_1 = arith.constant 0 : i32
    return %c0_i32, %c0_i32_0 : i32, i32
  }
  func.func @transform_3(%arg0: i32) -> (i32, i32) {
    %c0_i32 = arith.constant 0 : i32
    %c0_i32_0 = arith.constant 0 : i32
    %c0_i32_1 = arith.constant 0 : i32
    return %c0_i32, %c0_i32_0 : i32, i32
  }
  func.func @transform_4(%arg0: i32) -> (i32, i32) {
    %c0_i32 = arith.constant 0 : i32
    %c0_i32_0 = arith.constant 0 : i32
    %c0_i32_1 = arith.constant 0 : i32
    return %c0_i32, %c0_i32_0 : i32, i32
  }
  func.func @transform_5(%arg0: i32) -> (i32, i32) {
    %c0_i32 = arith.constant 0 : i32
    %c0_i32_0 = arith.constant 0 : i32
    %c0_i32_1 = arith.constant 0 : i32
    return %c0_i32, %c0_i32_0 : i32, i32
  }
  func.func @transform_6(%arg0: i32) -> (i32, i32) {
    %c0_i32 = arith.constant 0 : i32
    %c0_i32_0 = arith.constant 0 : i32
    return %arg0, %c0_i32 : i32, i32
  }
}

</mosaic_0001>

<llo_original>
// kernel: predictor_forward.1
$region0: #{predictor_forward.1}
  #allocation0 [shape = 'u32[]', space=smem, size = 0x4, offset = 0x4, fixed_abs, tag = 'smem constant byte address 0x4 - core index']
  #allocation1 [shape = 'u32[72,128]{1,0:T(1,128)}', space=vmem, size = 0x9000, scoped, tag = 'internal scratch']
  %s0 = inlined_call_operand.vmem [shape: f32[8,32], index: 0, kind: input, shape index: {}]
  %s1 = inlined_call_operand.vmem [shape: s32[8,1], index: 1, kind: input, shape index: {}]
  %s2 = inlined_call_operand.vmem [shape: f32[8,128], index: 2, kind: input, shape index: {}]
  %s3 = inlined_call_operand.vmem [shape: f32[32,128], index: 3, kind: input, shape index: {}]
  %s4 = inlined_call_operand.vmem [shape: f32[128,32], index: 4, kind: input, shape index: {}]
  %s5 = inlined_call_operand.vmem [shape: f32[1,32], index: 5, kind: input, shape index: {}]
  %s6 = inlined_call_operand.hbm [shape: f32[8,32], index: 6, kind: output, shape index: {}]
  %s7 = sld [smem:[#allocation0]]
  $region34: #{predictor_forward.1} parent=0
    _
  %s9 = ssub.s32 1, %s7
  %s10 = scalar_select 0, %s9, %s7
  $region1: #{predictor_forward.1} parent=0
    #allocation2 [shape = 'u8[4096]{0}', space=vmem, size = 0x1000, scoped, tag = 'output window, operand 0, single buffered']
    #allocation3 [shape = 's32[1]{0}', space=sflag, size = 0x4, scoped, tag = 'scoped memory for predictor_forward.1']
    %11 = vsyncpa [#allocation3], 0
    // Predicated region
    $region2: #{predictor_forward.1} parent=1 // pred_check
      _
    $region3: #{predictor_forward.1} parent=1 // pred_check_branch
      %13 = sbr.rel (0) target = $region5
    $region4: #{predictor_forward.1} parent=1 // pred_region
      _
    $region5: #{predictor_forward.1} parent=1 // pred_fallthru
      _
    // Predicated region
    $region6: #{predictor_forward.1} parent=1 // pred_check
      _
    $region7: #{predictor_forward.1} parent=1 // pred_check_branch
      %15 = sbr.rel (0) target = $region9
    $region8: #{predictor_forward.1} parent=1 // pred_region
      _
    $region9: #{predictor_forward.1} parent=1 // pred_fallthru
      _
    // Predicated region
    $region10: #{predictor_forward.1} parent=1 // pred_check
      _
    $region11: #{predictor_forward.1} parent=1 // pred_check_branch
      %17 = sbr.rel (0) target = $region13
    $region12: #{predictor_forward.1} parent=1 // pred_region
      _
    $region13: #{predictor_forward.1} parent=1 // pred_fallthru
      _
    // Predicated region
    $region14: #{predictor_forward.1} parent=1 // pred_check
      _
    $region15: #{predictor_forward.1} parent=1 // pred_check_branch
      %19 = sbr.rel (0) target = $region17
    $region16: #{predictor_forward.1} parent=1 // pred_region
      _
    $region17: #{predictor_forward.1} parent=1 // pred_fallthru
      _
    // Predicated region
    $region18: #{predictor_forward.1} parent=1 // pred_check
      _
    $region19: #{predictor_forward.1} parent=1 // pred_check_branch
      %21 = sbr.rel (0) target = $region21
    $region20: #{predictor_forward.1} parent=1 // pred_region
      _
    $region21: #{predictor_forward.1} parent=1 // pred_fallthru
      _
    // Predicated region
    $region22: #{predictor_forward.1} parent=1 // pred_check
      _
    $region23: #{predictor_forward.1} parent=1 // pred_check_branch
      %23 = sbr.rel (0) target = $region25
    $region24: #{predictor_forward.1} parent=1 // pred_region
      _
    $region25: #{predictor_forward.1} parent=1 // pred_fallthru
      _
    %v24 = vld [vmem:[%s0] sm:$0xff]
    %v25 = vlaneseq
    %v26 = vand.u32 %v25, 127
    %v27 = vld [vmem:[%s1] sm:$0xff]
    %28 = vset.pattern.permute.xlu0 0
    %29 = vperm.xlu0 %28, %v27
    %v30 = vpop.permute.xlu0 %29
    %vm31 = vcmp.eq.s32.totalorder %v30, %v26
    %v32 = vsel %vm31, 1, 0
    %v33 = vcvt.s32.f32 %v32
    %v34 = vld [vmem:[%s2] sm:$0xff]
    %vm35 = vcmask 64512
    %v37 = vsel %vm35, %v33, 0
    %39 = vmatpush.msra.mxu0 0.0
    %40 = vmatpush.msra.mxu0 0.0
    %41 = vmatpush.msra.mxu0 0.0
    %42 = vmatpush.msra.mxu0 0.0
    %43 = vmatpush.msra.mxu0 0.0
    %44 = vmatpush.msra.mxu0 0.0
    %45 = vmatpush.msra.mxu0 0.0
    %46 = vmatpush.msra.mxu0 0.0
    %47 = vmatpush.msra.mxu0 0.0
    %48 = vmatpush.msra.mxu0 0.0
    %49 = vmatpush.msra.mxu0 0.0
    %50 = vmatpush.msra.mxu0 0.0
    %51 = vmatpush.msra.mxu0 0.0
    %52 = vmatpush.msra.mxu0 0.0
    %53 = vmatpush.msra.mxu0 0.0
    %54 = vmatpush.msra.mxu0 %v34
    %55 = vmatmul.f32.gmra.mxu0 %v37
    %v56 = vpop.f32.mrf.mxu0
    %v57 = vadd.f32 0.0, %v56
    %58 = vdwg.mxu0
    %v59 = vld [vmem:[%s3] sm:$0xff]
    %v60 = vld [vmem:[%s3 + $0x8] sm:$0xff]
    %v61 = vld [vmem:[%s3 + $0x10] sm:$0xff]
    %v62 = vld [vmem:[%s3 + $0x18] sm:$0xff]
    %vm63 = vcmask 261120
    %v65 = vsel %vm63, %v24, 0
    %67 = vmatpush.msra.mxu0 0.0
    %68 = vmatpush.msra.mxu0 0.0
    %69 = vmatpush.msra.mxu0 0.0
    %70 = vmatpush.msra.mxu0 0.0
    %71 = vmatpush.msra.mxu0 0.0
    %72 = vmatpush.msra.mxu0 0.0
    %73 = vmatpush.msra.mxu0 0.0
    %74 = vmatpush.msra.mxu0 0.0
    %75 = vmatpush.msra.mxu0 0.0
    %76 = vmatpush.msra.mxu0 0.0
    %77 = vmatpush.msra.mxu0 0.0
    %78 = vmatpush.msra.mxu0 0.0
    %79 = vmatpush.msra.mxu0 %v62
    %80 = vmatpush.msra.mxu0 %v61
    %81 = vmatpush.msra.mxu0 %v60
    %82 = vmatpush.msra.mxu0 %v59
    %83 = vmatmul.f32.gmra.mxu0 %v65
    %v84 = vpop.f32.mrf.mxu0
    %v85 = vadd.f32 %v57, %v84
    %86 = vdwg.mxu0
    %v87 = vmax.f32 %v85, 0.0
    %v88 = vld [vmem:[%s4] sm:$0xff]
    %v89 = vld [vmem:[%s4 + $0x8] sm:$0xff]
    %v90 = vld [vmem:[%s4 + $0x10] sm:$0xff]
    %v91 = vld [vmem:[%s4 + $0x18] sm:$0xff]
    %v92 = vld [vmem:[%s4 + $0x20] sm:$0xff]
    %v93 = vld [vmem:[%s4 + $0x28] sm:$0xff]
    %v94 = vld [vmem:[%s4 + $0x30] sm:$0xff]
    %v95 = vld [vmem:[%s4 + $0x38] sm:$0xff]
    %v96 = vld [vmem:[%s4 + $0x40] sm:$0xff]
    %v97 = vld [vmem:[%s4 + $0x48] sm:$0xff]
    %v98 = vld [vmem:[%s4 + $0x50] sm:$0xff]
    %v99 = vld [vmem:[%s4 + $0x58] sm:$0xff]
    %v100 = vld [vmem:[%s4 + $0x60] sm:$0xff]
    %v101 = vld [vmem:[%s4 + $0x68] sm:$0xff]
    %v102 = vld [vmem:[%s4 + $0x70] sm:$0xff]
    %v103 = vld [vmem:[%s4 + $0x78] sm:$0xff]
    %v104 = vld [vmem:[%s5] sm:$0x1]
    %v106 = vperm.slane %v104, 0
    %108 = vmatpush.msra.mxu0 %v103
    %109 = vmatpush.msra.mxu0 %v102
    %110 = vmatpush.msra.mxu0 %v101
    %111 = vmatpush.msra.mxu0 %v100
    %112 = vmatpush.msra.mxu0 %v99
    %113 = vmatpush.msra.mxu0 %v98
    %114 = vmatpush.msra.mxu0 %v97
    %115 = vmatpush.msra.mxu0 %v96
    %116 = vmatpush.msra.mxu0 %v95
    %117 = vmatpush.msra.mxu0 %v94
    %118 = vmatpush.msra.mxu0 %v93
    %119 = vmatpush.msra.mxu0 %v92
    %120 = vmatpush.msra.mxu0 %v91
    %121 = vmatpush.msra.mxu0 %v90
    %122 = vmatpush.msra.mxu0 %v89
    %123 = vmatpush.msra.mxu0 %v88
    %124 = vmatmul.f32.gmra.mxu0 %v87
    %v125 = vpop.f32.mrf.mxu0
    %v126 = vadd.f32 %v106, %v125
    %127 = vdwg.mxu0
    %v128 = vadd.f32 %v24, %v126
    %129 = vst.msk [vmem:[#allocation2] sm:$0xff] %vm63, %v128
    // Predicated region
    $region26: #{predictor_forward.1} parent=1 // pred_check
      _
    $region27: #{predictor_forward.1} parent=1 // pred_check_branch
      %131 = sbr.rel (0) target = $region29
    $region28: #{predictor_forward.1} parent=1 // pred_region
      %133 = vsyncadd [#allocation3], 0
      %s135 = sshll.u32 [#allocation2], 4
      %s136 = int_to_ptr.vmem [resolvable:$true] %s135
      %s137 = sshll.u32 %s6, 4
      %s138 = int_to_ptr.hbm [resolvable:$true] %s137
      %140 = dma.vmem_to_hbm [thread:$0]  %s136, 128, %s138, [#allocation3]
    $region29: #{predictor_forward.1} parent=1 // pred_fallthru
      _
    // Predicated region
    $region30: #{predictor_forward.1} parent=1 // pred_check
      _
    $region31: #{predictor_forward.1} parent=1 // pred_check_branch
      %142 = sbr.rel (0) target = $region33
    $region32: #{predictor_forward.1} parent=1 // pred_region
      %144 = dma.done [#allocation3], 128
    $region33: #{predictor_forward.1} parent=1 // pred_fallthru
      _
    %145 = vsyncpa [#allocation3], 1

</llo_original>
